<compile_context>
chip_gen: v6e
topology: v6e:2x2x1
jax: 0.10.0
libtpu: 0.0.40
codegen_flags: <defaults>
</compile_context>

<pallas_src>
import jax
import jax.numpy as jnp
import numpy as np
from jax.experimental import pallas as pl
from jax.experimental.pallas import tpu as pltpu


def _r8(n):
    """Round up to a sublane (8-row) boundary."""
    return ((n + 7) // 8) * 8


def _pad_rows(x, rows):
    pad = rows - x.shape[0]
    if pad:
        x = jnp.concatenate([x, jnp.zeros((pad, x.shape[1]), x.dtype)], axis=0)
    return x


def decoder_kernel(ids_ref, embed_ref, h_ref, enc_ref, attn_ref, gru_ref, outw_ref,
                   out_ref, hid_ref):
    B, S, H = enc_ref.shape
    O, E = embed_ref.shape

    # Static packed-row offsets (must mirror prepare_decoder_params).
    a_w1h = _r8(H)
    a_b1 = a_w1h + _r8(H)
    a_w2 = a_b1 + 8
    g_whh = _r8(E + H)
    g_bih = g_whh + _r8(H)
    g_bhh = g_bih + 8
    o_b = _r8(2 * H)

    # ---------------- Fused embedding gather ----------------
    # Token ids live in SMEM; one-hot @ table keeps the gather on the MXU and
    # avoids dynamic sublane indexing.  Dropout(p=0.2): eval-mode identity.
    # TODO(synk): training-time dropout not modeled (inference semantics).
    iota_o = jax.lax.broadcasted_iota(jnp.int32, (1, O), 1)
    onehot = jnp.concatenate(
        [(iota_o == ids_ref[b]).astype(jnp.float32) for b in range(B)], axis=0)   # (B, O)
    emb = jnp.dot(onehot, embed_ref[...], preferred_element_type=jnp.float32)     # (B, E)

    h_prev = h_ref[...]            # (B, H)   == last_hidden[-1]
    enc = enc_ref[...]             # (B, S, H)
    attn = attn_ref[...]           # (2*r8(H)+16, H)
    gru_w = gru_ref[...]           # (r8(E+H)+r8(H)+16, 3H)
    outw = outw_ref[...]           # (r8(2H)+8, O)

    # ---------------- Attention ----------------
    w1e = attn[0:H, :]
    w1h = attn[a_w1h:a_w1h + H, :]
    b1 = attn[a_b1:a_b1 + 1, :]          # (1, H)  tile-aligned row
    w2 = attn[a_w2:a_w2 + 1, :]          # (1, H)  score row (attn2 bias dropped; softmax-invariant)

    # Flat matmul for the encoder part; (B,S)<->(B*S) reshape is sublane-tile
    # aligned when S % 8 == 0 (true here) so no VMEM relayout.
    a_enc = jnp.dot(enc.reshape(B * S, H), w1e,
                    preferred_element_type=jnp.float32).reshape(B, S, H)
    a_hid = jnp.dot(h_prev, w1h, preferred_element_type=jnp.float32)    # (B, H)
    t = jnp.tanh(a_enc + a_hid[:, None, :] + b1[None, :, :])            # (B, S, H)

    # Score: VPU multiply + lane reduce instead of a degenerate N=1 MXU matmul.
    e = jnp.sum(t * w2[None, :, :], axis=-1)                            # (B, S)
    e_max = jnp.max(e, axis=1, keepdims=True)
    p = jnp.exp(e - e_max)
    alpha = p * pl.reciprocal(jnp.sum(p, axis=1, keepdims=True), approx=True)
    context = jnp.sum(alpha[:, :, None] * enc, axis=1)                  # (B, H)

    # ---------------- GRU cell (1 layer, 1 step): fused input matmul ----------------
    x = jnp.concatenate([emb, context], axis=1)                         # (B, E+H)
    wih = gru_w[0:E + H, :]
    whh = gru_w[g_whh:g_whh + H, :]
    bih = gru_w[g_bih:g_bih + 1, :]
    bhh = gru_w[g_bhh:g_bhh + 1, :]

    gi = jnp.dot(x, wih, preferred_element_type=jnp.float32) + bih      # (B, 3H)
    gh = jnp.dot(h_prev, whh, preferred_element_type=jnp.float32) + bhh # (B, 3H)

    r = jax.nn.sigmoid(gi[:, 0 * H:1 * H] + gh[:, 0 * H:1 * H])
    z = jax.nn.sigmoid(gi[:, 1 * H:2 * H] + gh[:, 1 * H:2 * H])
    n = jnp.tanh(gi[:, 2 * H:3 * H] + r * gh[:, 2 * H:3 * H])
    h_new = (1.0 - z) * n + z * h_prev                                  # (B, H)

    # ---------------- Output projection + log_softmax: fused (B,2H)@(2H,O) ----------------
    y = jnp.concatenate([h_new, context], axis=1)                       # (B, 2H)
    wo = outw[0:2 * H, :]
    bo = outw[o_b:o_b + 1, :]
    logits = jnp.dot(y, wo, preferred_element_type=jnp.float32) + bo    # (B, O)
    m = jnp.max(logits, axis=1, keepdims=True)
    lse = jnp.log(jnp.sum(jnp.exp(logits - m), axis=1, keepdims=True)) + m

    out_ref[...] = logits - lse
    hid_ref[...] = h_new


def prepare_decoder_params(params):
    """One-time weight prep (transposes / splits / sublane-aligned packing)."""
    H, E, O = params["hidden_size"], params["embed_size"], params["output_size"]
    f32 = jnp.float32

    w1 = params["attn1_w"].astype(f32)                        # (H, 2H), input = cat([enc, h])
    attn_pack = jnp.concatenate([
        _pad_rows(jnp.transpose(w1[:, :H]), _r8(H)),          # encoder part
        _pad_rows(jnp.transpose(w1[:, H:]), _r8(H)),          # hidden part
        _pad_rows(params["attn1_b"].reshape(1, H).astype(f32), 8),
        _pad_rows(params["attn2_w"].reshape(1, H).astype(f32), 8),   # score row
    ], axis=0)                                                # (2*r8(H)+16, H)

    wih = params["gru_wih"].astype(f32)                       # (3H, E+H), input = cat([emb, ctx])
    gru_pack = jnp.concatenate([
        _pad_rows(jnp.transpose(wih), _r8(E + H)),            # fused (E+H, 3H)
        _pad_rows(jnp.transpose(params["gru_whh"].astype(f32)), _r8(H)),
        _pad_rows(params["gru_bih"].reshape(1, 3 * H).astype(f32), 8),
        _pad_rows(params["gru_bhh"].reshape(1, 3 * H).astype(f32), 8),
    ], axis=0)                                                # (r8(E+H)+r8(H)+16, 3H)

    wout = params["out_w"].astype(f32)                        # (O, 2H), input = cat([h_new, ctx])
    out_pack = jnp.concatenate([
        _pad_rows(jnp.transpose(wout), _r8(2 * H)),           # fused (2H, O)
        _pad_rows(params["out_b"].reshape(1, O).astype(f32), 8),
    ], axis=0)                                                # (r8(2H)+8, O)

    return dict(embed_w=params["embed_w"].astype(f32),
                attn_pack=attn_pack, gru_pack=gru_pack, out_pack=out_pack)


def decoder_forward(prepped, token_ids, h_prev, enc_bsh):
    """token_ids: (B,) int32, h_prev: (B, H), enc_bsh: (B, S, H) (transposed once, off the step path)."""
    embed_w = prepped["embed_w"]
    attn_pack = prepped["attn_pack"]
    gru_pack = prepped["gru_pack"]
    out_pack = prepped["out_pack"]
    B, S, H = enc_bsh.shape
    O, E = embed_w.shape

    flops = 2 * (B * O * E + B * S * H * H + B * H * H + 2 * B * S * H
                 + B * (E + H) * 3 * H + B * H * 3 * H + B * 2 * H * O)
    bytes_accessed = 4 * (embed_w.size + attn_pack.size + gru_pack.size
                          + out_pack.size + enc_bsh.size + 2 * B * H + B * O)

    vmem = pl.BlockSpec(memory_space=pltpu.MemorySpace.VMEM)
    smem = pl.BlockSpec(memory_space=pltpu.MemorySpace.SMEM)
    out, h_new = pl.pallas_call(
        decoder_kernel,
        out_shape=(jax.ShapeDtypeStruct((B, O), jnp.float32),
                   jax.ShapeDtypeStruct((B, H), jnp.float32)),
        in_specs=[smem, vmem, vmem, vmem, vmem, vmem, vmem],
        out_specs=(vmem, vmem),
        input_output_aliases={2: 1},     # h_prev buffer rewritten in place with the new hidden
        compiler_params=pltpu.CompilerParams(vmem_limit_bytes=32 << 20),
        cost_estimate=pl.CostEstimate(flops=int(flops),
                                      transcendentals=int(B * (S + 4 * H + O)),
                                      bytes_accessed=int(bytes_accessed)),
    )(token_ids, embed_w, h_prev, enc_bsh, attn_pack, gru_pack, out_pack)
    return out, h_new


def decoder_reference(params, token_ids, last_hidden, encoder_outputs):
    """Plain-JAX replica of the PyTorch forward (for verification)."""
    H, E = params["hidden_size"], params["embed_size"]
    embedded = jnp.take(params["embed_w"], token_ids, axis=0)[None]  # (1, B, E)
    hidden = last_hidden[-1]                                         # (B, H)
    S, B, _ = encoder_outputs.shape
    h = jnp.broadcast_to(hidden[None], (S, B, H)).transpose(1, 0, 2)
    enc = encoder_outputs.transpose(1, 0, 2)                         # (B, S, H)
    inputs = jnp.concatenate([enc, h], axis=2).reshape(-1, 2 * H)
    o = (jnp.tanh(inputs @ params["attn1_w"].T + params["attn1_b"])
         @ params["attn2_w"].T + params["attn2_b"])
    e = o.reshape(B, S)
    alpha = jax.nn.softmax(e, axis=1)
    context = jnp.einsum("bs,bsh->bh", alpha, enc)                   # (B, H)

    x = jnp.concatenate([embedded[0], context], axis=1)              # (B, E+H)
    gi = x @ params["gru_wih"].T + params["gru_bih"]
    gh = hidden @ params["gru_whh"].T + params["gru_bhh"]
    r = jax.nn.sigmoid(gi[:, :H] + gh[:, :H])
    z = jax.nn.sigmoid(gi[:, H:2 * H] + gh[:, H:2 * H])
    n = jnp.tanh(gi[:, 2 * H:] + r * gh[:, 2 * H:])
    h_new = (1.0 - z) * n + z * hidden

    out = (jnp.concatenate([h_new, context], axis=1) @ params["out_w"].T
           + params["out_b"])
    out = jax.nn.log_softmax(out, axis=1)
    return out, h_new[None]


if __name__ == "__main__":
    B, S = 2, 8           # batch, encoder sequence length
    E, H, O = 16, 32, 24  # embed_size, hidden_size, output_size (vocab)

    key = jax.random.PRNGKey(0)
    ks = jax.random.split(key, 13)

    def rnd(k, shape, scale=0.1):
        return scale * jax.random.normal(k, shape, dtype=jnp.float32)

    params = dict(
        hidden_size=H, embed_size=E, output_size=O,
        embed_w=rnd(ks[0], (O, E), 1.0),
        attn1_w=rnd(ks[1], (H, 2 * H)), attn1_b=rnd(ks[2], (H,)),
        attn2_w=rnd(ks[3], (1, H)), attn2_b=rnd(ks[4], (1,)),
        gru_wih=rnd(ks[5], (3 * H, H + E)), gru_whh=rnd(ks[6], (3 * H, H)),
        gru_bih=rnd(ks[7], (3 * H,)), gru_bhh=rnd(ks[8], (3 * H,)),
        out_w=rnd(ks[9], (O, 2 * H)), out_b=rnd(ks[10], (O,)),
    )

    token_ids = jnp.array([3, 17], dtype=jnp.int32)                  # (B,)
    last_hidden = rnd(ks[11], (1, B, H), 0.5)                        # (n_layers=1, B, H)
    encoder_outputs = rnd(ks[12], (S, B, H), 0.5)                    # (S, B, H)

    # One-time prep: weight packing + encoder relayout to (B, S, H) (hoisted off
    # the per-step decode path).
    prepped = prepare_decoder_params(params)
    enc_bsh = jnp.transpose(encoder_outputs, (1, 0, 2))              # (B, S, H)

    # Hidden state carried as plain (B, H) and donated so the in-place alias holds
    # across decode steps.
    decoder_step = jax.jit(decoder_forward, donate_argnums=(2,))

    out, h_new = decoder_step(prepped, token_ids, last_hidden[0], enc_bsh)
    jax.block_until_ready((out, h_new))
    hidden = h_new[None]                                             # (1, B, H) module parity

    ref_out, ref_hidden = decoder_reference(params, token_ids, last_hidden,
                                            encoder_outputs)
    # Small slack for the approximate reciprocal (EUP vrcp) in the attention softmax.
    np.testing.assert_allclose(np.asarray(out), np.asarray(ref_out),
                               atol=2e-3, rtol=2e-3)
    np.testing.assert_allclose(np.asarray(hidden), np.asarray(ref_hidden),
                               atol=2e-3, rtol=2e-3)

    print("KERNEL_OK")
</pallas_src>

<mosaic_0001>
module attributes {stable_mosaic.version = 11 : i64} {
  func.func @decoder_kernel(%arg0: memref<2xi32, #tpu.memory_space<smem>>, %arg1: memref<24x16xf32, #tpu.memory_space<vmem>>, %arg2: memref<2x32xf32, #tpu.memory_space<vmem>>, %arg3: memref<2x8x32xf32, #tpu.memory_space<vmem>>, %arg4: memref<80x32xf32, #tpu.memory_space<vmem>>, %arg5: memref<96x96xf32, #tpu.memory_space<vmem>>, %arg6: memref<72x24xf32, #tpu.memory_space<vmem>>, %arg7: memref<2x24xf32, #tpu.memory_space<vmem>>, %arg8: memref<2x32xf32, #tpu.memory_space<vmem>>) attributes {dimension_semantics = [], scalar_prefetch = 0 : i64, scratch_operands = 0 : i64, tpu.core_type = #tpu.core_type<tc>} {
    %0 = tpu.iota {dimensions = array<i32: 1>} : vector<1x24xi32>
    %c0 = arith.constant 0 : index
    %1 = memref.load %arg0[%c0] : memref<2xi32, #tpu.memory_space<smem>>
    %2 = vector.broadcast %1 : i32 to vector<1x24xi32>
    %3 = arith.cmpi eq, %0, %2 : vector<1x24xi32>
    %4 = arith.extui %3 : vector<1x24xi1> to vector<1x24xi32>
    %5 = arith.sitofp %4 : vector<1x24xi32> to vector<1x24xf32>
    %c1 = arith.constant 1 : index
    %6 = memref.load %arg0[%c1] : memref<2xi32, #tpu.memory_space<smem>>
    %7 = vector.broadcast %6 : i32 to vector<1x24xi32>
    %8 = arith.cmpi eq, %0, %7 : vector<1x24xi32>
    %9 = arith.extui %8 : vector<1x24xi1> to vector<1x24xi32>
    %10 = arith.sitofp %9 : vector<1x24xi32> to vector<1x24xf32>
    %11 = tpu.concatenate %5, %10 in 0 : vector<1x24xf32>, vector<1x24xf32> -> vector<2x24xf32>
    %c0_0 = arith.constant 0 : index
    %c0_1 = arith.constant 0 : index
    %12 = vector.load %arg1[%c0_0, %c0_1] : memref<24x16xf32, #tpu.memory_space<vmem>>, vector<24x16xf32>
    %cst = arith.constant dense<0.000000e+00> : vector<2x16xf32>
    %13 = tpu.matmul %11, %12, %cst {dimension_numbers = #tpu.dot_dimension_numbers<[1], [0], [0], [1], [0, 0, 1, 1], [], []>} : vector<2x24xf32>, vector<24x16xf32>, vector<2x16xf32> -> vector<2x16xf32>
    %c0_2 = arith.constant 0 : index
    %c0_3 = arith.constant 0 : index
    %14 = vector.load %arg2[%c0_2, %c0_3] : memref<2x32xf32, #tpu.memory_space<vmem>>, vector<2x32xf32>
    %c0_4 = arith.constant 0 : index
    %c0_5 = arith.constant 0 : index
    %c0_6 = arith.constant 0 : index
    %15 = vector.load %arg3[%c0_4, %c0_5, %c0_6] : memref<2x8x32xf32, #tpu.memory_space<vmem>>, vector<2x8x32xf32>
    %c0_7 = arith.constant 0 : index
    %c0_8 = arith.constant 0 : index
    %16 = vector.load %arg4[%c0_7, %c0_8] : memref<80x32xf32, #tpu.memory_space<vmem>>, vector<80x32xf32>
    %c0_9 = arith.constant 0 : index
    %c0_10 = arith.constant 0 : index
    %17 = vector.load %arg5[%c0_9, %c0_10] : memref<96x96xf32, #tpu.memory_space<vmem>>, vector<96x96xf32>
    %c0_11 = arith.constant 0 : index
    %c0_12 = arith.constant 0 : index
    %18 = vector.load %arg6[%c0_11, %c0_12] : memref<72x24xf32, #tpu.memory_space<vmem>>, vector<72x24xf32>
    %19 = vector.extract_strided_slice %16 {offsets = [0, 0], sizes = [32, 32], strides = [1, 1]} : vector<80x32xf32> to vector<32x32xf32>
    %20 = vector.extract_strided_slice %16 {offsets = [32, 0], sizes = [32, 32], strides = [1, 1]} : vector<80x32xf32> to vector<32x32xf32>
    %21 = vector.extract_strided_slice %16 {offsets = [64, 0], sizes = [1, 32], strides = [1, 1]} : vector<80x32xf32> to vector<1x32xf32>
    %22 = vector.extract_strided_slice %16 {offsets = [72, 0], sizes = [1, 32], strides = [1, 1]} : vector<80x32xf32> to vector<1x32xf32>
    %23 = vector.shape_cast %15 : vector<2x8x32xf32> to vector<16x32xf32>
    %cst_13 = arith.constant dense<0.000000e+00> : vector<16x32xf32>
    %24 = tpu.matmul %23, %19, %cst_13 {dimension_numbers = #tpu.dot_dimension_numbers<[1], [0], [0], [1], [0, 0, 1, 1], [], []>} : vector<16x32xf32>, vector<32x32xf32>, vector<16x32xf32> -> vector<16x32xf32>
    %25 = vector.shape_cast %24 : vector<16x32xf32> to vector<2x8x32xf32>
    %cst_14 = arith.constant dense<0.000000e+00> : vector<2x32xf32>
    %26 = tpu.matmul %14, %20, %cst_14 {dimension_numbers = #tpu.dot_dimension_numbers<[1], [0], [0], [1], [0, 0, 1, 1], [], []>} : vector<2x32xf32>, vector<32x32xf32>, vector<2x32xf32> -> vector<2x32xf32>
    %27 = vector.shape_cast %26 : vector<2x32xf32> to vector<2x1x32xf32>
    %28 = vector.broadcast %27 : vector<2x1x32xf32> to vector<2x8x32xf32>
    %29 = arith.addf %25, %28 : vector<2x8x32xf32>
    %30 = vector.shape_cast %21 : vector<1x32xf32> to vector<1x1x32xf32>
    %31 = vector.broadcast %30 : vector<1x1x32xf32> to vector<2x8x32xf32>
    %32 = arith.addf %29, %31 : vector<2x8x32xf32>
    %33 = math.tanh %32 : vector<2x8x32xf32>
    %34 = vector.shape_cast %22 : vector<1x32xf32> to vector<1x1x32xf32>
    %35 = vector.broadcast %34 : vector<1x1x32xf32> to vector<2x8x32xf32>
    %36 = arith.mulf %33, %35 : vector<2x8x32xf32>
    %cst_15 = arith.constant dense<0.000000e+00> : vector<2x8xf32>
    %37 = vector.multi_reduction <add>, %36, %cst_15 [2] : vector<2x8x32xf32> to vector<2x8xf32>
    %cst_16 = arith.constant dense<0xFF800000> : vector<2xf32>
    %38 = vector.multi_reduction <maximumf>, %37, %cst_16 [1] : vector<2x8xf32> to vector<2xf32>
    %39 = vector.shape_cast %38 : vector<2xf32> to vector<2x1xf32>
    %40 = vector.broadcast %39 : vector<2x1xf32> to vector<2x8xf32>
    %41 = arith.subf %37, %40 : vector<2x8xf32>
    %42 = math.exp %41 : vector<2x8xf32>
    %cst_17 = arith.constant dense<0.000000e+00> : vector<2xf32>
    %43 = vector.multi_reduction <add>, %42, %cst_17 [1] : vector<2x8xf32> to vector<2xf32>
    %44 = vector.shape_cast %43 : vector<2xf32> to vector<2x1xf32>
    %45 = tpu.reciprocal %44 {approx = true} : vector<2x1xf32> -> vector<2x1xf32>
    %46 = vector.broadcast %45 : vector<2x1xf32> to vector<2x8xf32>
    %47 = arith.mulf %42, %46 : vector<2x8xf32>
    %48 = vector.shape_cast %47 : vector<2x8xf32> to vector<2x8x1xf32>
    %49 = vector.broadcast %48 : vector<2x8x1xf32> to vector<2x8x32xf32>
    %50 = arith.mulf %49, %15 : vector<2x8x32xf32>
    %cst_18 = arith.constant dense<0.000000e+00> : vector<2x32xf32>
    %51 = vector.multi_reduction <add>, %50, %cst_18 [1] : vector<2x8x32xf32> to vector<2x32xf32>
    %52 = tpu.concatenate %13, %51 in 1 : vector<2x16xf32>, vector<2x32xf32> -> vector<2x48xf32>
    %53 = vector.extract_strided_slice %17 {offsets = [0, 0], sizes = [48, 96], strides = [1, 1]} : vector<96x96xf32> to vector<48x96xf32>
    %54 = vector.extract_strided_slice %17 {offsets = [48, 0], sizes = [32, 96], strides = [1, 1]} : vector<96x96xf32> to vector<32x96xf32>
    %55 = vector.extract_strided_slice %17 {offsets = [80, 0], sizes = [1, 96], strides = [1, 1]} : vector<96x96xf32> to vector<1x96xf32>
    %56 = vector.extract_strided_slice %17 {offsets = [88, 0], sizes = [1, 96], strides = [1, 1]} : vector<96x96xf32> to vector<1x96xf32>
    %cst_19 = arith.constant dense<0.000000e+00> : vector<2x96xf32>
    %57 = tpu.matmul %52, %53, %cst_19 {dimension_numbers = #tpu.dot_dimension_numbers<[1], [0], [0], [1], [0, 0, 1, 1], [], []>} : vector<2x48xf32>, vector<48x96xf32>, vector<2x96xf32> -> vector<2x96xf32>
    %58 = vector.broadcast %55 : vector<1x96xf32> to vector<2x96xf32>
    %59 = arith.addf %57, %58 : vector<2x96xf32>
    %cst_20 = arith.constant dense<0.000000e+00> : vector<2x96xf32>
    %60 = tpu.matmul %14, %54, %cst_20 {dimension_numbers = #tpu.dot_dimension_numbers<[1], [0], [0], [1], [0, 0, 1, 1], [], []>} : vector<2x32xf32>, vector<32x96xf32>, vector<2x96xf32> -> vector<2x96xf32>
    %61 = vector.broadcast %56 : vector<1x96xf32> to vector<2x96xf32>
    %62 = arith.addf %60, %61 : vector<2x96xf32>
    %63 = vector.extract_strided_slice %59 {offsets = [0, 0], sizes = [2, 32], strides = [1, 1]} : vector<2x96xf32> to vector<2x32xf32>
    %64 = vector.extract_strided_slice %62 {offsets = [0, 0], sizes = [2, 32], strides = [1, 1]} : vector<2x96xf32> to vector<2x32xf32>
    %65 = arith.addf %63, %64 : vector<2x32xf32>
    %66 = arith.negf %65 : vector<2x32xf32>
    %67 = math.exp %66 : vector<2x32xf32>
    %cst_21 = arith.constant 1.000000e+00 : f32
    %68 = vector.broadcast %cst_21 : f32 to vector<2x32xf32>
    %69 = arith.addf %68, %67 : vector<2x32xf32>
    %70 = arith.divf %68, %69 : vector<2x32xf32>
    %71 = vector.extract_strided_slice %59 {offsets = [0, 32], sizes = [2, 32], strides = [1, 1]} : vector<2x96xf32> to vector<2x32xf32>
    %72 = vector.extract_strided_slice %62 {offsets = [0, 32], sizes = [2, 32], strides = [1, 1]} : vector<2x96xf32> to vector<2x32xf32>
    %73 = arith.addf %71, %72 : vector<2x32xf32>
    %74 = arith.negf %73 : vector<2x32xf32>
    %75 = math.exp %74 : vector<2x32xf32>
    %cst_22 = arith.constant 1.000000e+00 : f32
    %76 = vector.broadcast %cst_22 : f32 to vector<2x32xf32>
    %77 = arith.addf %76, %75 : vector<2x32xf32>
    %78 = arith.divf %76, %77 : vector<2x32xf32>
    %79 = vector.extract_strided_slice %59 {offsets = [0, 64], sizes = [2, 32], strides = [1, 1]} : vector<2x96xf32> to vector<2x32xf32>
    %80 = vector.extract_strided_slice %62 {offsets = [0, 64], sizes = [2, 32], strides = [1, 1]} : vector<2x96xf32> to vector<2x32xf32>
    %81 = arith.mulf %70, %80 : vector<2x32xf32>
    %82 = arith.addf %79, %81 : vector<2x32xf32>
    %83 = math.tanh %82 : vector<2x32xf32>
    %cst_23 = arith.constant 1.000000e+00 : f32
    %84 = vector.broadcast %cst_23 : f32 to vector<2x32xf32>
    %85 = arith.subf %84, %78 : vector<2x32xf32>
    %86 = arith.mulf %85, %83 : vector<2x32xf32>
    %87 = arith.mulf %78, %14 : vector<2x32xf32>
    %88 = arith.addf %86, %87 : vector<2x32xf32>
    %89 = tpu.concatenate %88, %51 in 1 : vector<2x32xf32>, vector<2x32xf32> -> vector<2x64xf32>
    %90 = vector.extract_strided_slice %18 {offsets = [0, 0], sizes = [64, 24], strides = [1, 1]} : vector<72x24xf32> to vector<64x24xf32>
    %91 = vector.extract_strided_slice %18 {offsets = [64, 0], sizes = [1, 24], strides = [1, 1]} : vector<72x24xf32> to vector<1x24xf32>
    %cst_24 = arith.constant dense<0.000000e+00> : vector<2x24xf32>
    %92 = tpu.matmul %89, %90, %cst_24 {dimension_numbers = #tpu.dot_dimension_numbers<[1], [0], [0], [1], [0, 0, 1, 1], [], []>} : vector<2x64xf32>, vector<64x24xf32>, vector<2x24xf32> -> vector<2x24xf32>
    %93 = vector.broadcast %91 : vector<1x24xf32> to vector<2x24xf32>
    %94 = arith.addf %92, %93 : vector<2x24xf32>
    %cst_25 = arith.constant dense<0xFF800000> : vector<2xf32>
    %95 = vector.multi_reduction <maximumf>, %94, %cst_25 [1] : vector<2x24xf32> to vector<2xf32>
    %96 = vector.shape_cast %95 : vector<2xf32> to vector<2x1xf32>
    %97 = vector.broadcast %96 : vector<2x1xf32> to vector<2x24xf32>
    %98 = arith.subf %94, %97 : vector<2x24xf32>
    %99 = math.exp %98 : vector<2x24xf32>
    %cst_26 = arith.constant dense<0.000000e+00> : vector<2xf32>
    %100 = vector.multi_reduction <add>, %99, %cst_26 [1] : vector<2x24xf32> to vector<2xf32>
    %101 = vector.shape_cast %100 : vector<2xf32> to vector<2x1xf32>
    %102 = math.log %101 : vector<2x1xf32>
    %103 = arith.addf %102, %96 : vector<2x1xf32>
    %104 = vector.broadcast %103 : vector<2x1xf32> to vector<2x24xf32>
    %105 = arith.subf %94, %104 : vector<2x24xf32>
    %c0_27 = arith.constant 0 : index
    %c0_28 = arith.constant 0 : index
    %106 = vector.load %arg7[%c0_27, %c0_28] : memref<2x24xf32, #tpu.memory_space<vmem>>, vector<2x24xf32>
    tpu.vector_store %arg7[%c0_27, %c0_28], %105 {strides = array<i32>} : memref<2x24xf32, #tpu.memory_space<vmem>>, vector<2x24xf32>,
    %c0_29 = arith.constant 0 : index
    %c0_30 = arith.constant 0 : index
    %107 = vector.load %arg8[%c0_29, %c0_30] : memref<2x32xf32, #tpu.memory_space<vmem>>, vector<2x32xf32>
    tpu.vector_store %arg8[%c0_29, %c0_30], %88 {strides = array<i32>} : memref<2x32xf32, #tpu.memory_space<vmem>>, vector<2x32xf32>,
    return
  }
}

</mosaic_0001>

<llo_original>
// kernel: decoder_forward.1
$region0: #{decoder_forward.1}
  #allocation0 [shape = 'u32[]', space=smem, size = 0x4, offset = 0x4, fixed_abs, tag = 'smem constant byte address 0x4 - core index']
  #allocation1 [shape = 'u32[144,128]{1,0:T(1,128)}', space=vmem, size = 0x12000, scoped, tag = 'internal scratch']
  %s0 = inlined_call_operand.vmem [shape: s32[2], index: 0, kind: input, shape index: {}]
  %s1 = inlined_call_operand.vmem [shape: f32[24,16], index: 1, kind: input, shape index: {}]
  %s2 = inlined_call_operand.hbm [shape: f32[2,32], index: 2, kind: input, shape index: {}, may-alias: {2,8}]
  %s3 = inlined_call_operand.vmem [shape: f32[2,8,32], index: 3, kind: input, shape index: {}]
  %s4 = inlined_call_operand.vmem [shape: f32[80,32], index: 4, kind: input, shape index: {}]
  %s5 = inlined_call_operand.vmem [shape: f32[96,96], index: 5, kind: input, shape index: {}]
  %s6 = inlined_call_operand.vmem [shape: f32[72,24], index: 6, kind: input, shape index: {}]
  %s7 = inlined_call_operand.hbm [shape: f32[2,24], index: 7, kind: output, shape index: {0}]
  %s8 = inlined_call_operand.hbm [shape: f32[2,32], index: 8, kind: output, shape index: {1}, may-alias: {2,8}]
  %9 = xla_tuple %s7, %s8
  %s10 = sld [smem:[#allocation0]]
  $region54: #{decoder_forward.1} parent=0
    _
  %s12 = ssub.s32 1, %s10
  %s13 = scalar_select 0, %s12, %s10
  $region1: #{decoder_forward.1} parent=0
    #allocation2 [shape = 'u8[512]{0}', space=smem, size = 0x200, scoped, tag = 'input window, operand 0, single buffered']
    #allocation3 [shape = 's32[1]{0}', space=sflag, size = 0x4, scoped, tag = 'scoped memory for decoder_forward.1']
    #allocation4 [shape = 's32[1]{0}', space=sflag, size = 0x4, scoped, tag = 'scoped memory for decoder_forward.1']
    #allocation5 [shape = 's32[1]{0}', space=sflag, size = 0x4, scoped, tag = 'scoped memory for decoder_forward.1']
    #allocation6 [shape = 'u8[1024]{0}', space=vmem, size = 0x400, scoped, tag = 'input window, operand 2, single buffered']
    #allocation7 [shape = 'u8[1024]{0}', space=vmem, size = 0x400, scoped, tag = 'output window, operand 0, single buffered']
    #allocation8 [shape = 'u8[1024]{0}', space=vmem, size = 0x400, scoped, tag = 'output window, operand 1, single buffered']
    #allocation9 [shape = 's32[1]{0}', space=sflag, size = 0x4, scoped, tag = 'scoped memory for decoder_forward.1']
    %14 = vsyncpa [#allocation5], 0
    %15 = vsyncpa [#allocation3], 0
    %16 = vsyncpa [#allocation4], 0
    %17 = vsyncpa [#allocation9], 0
    // Predicated region
    $region2: #{decoder_forward.1} parent=1 // pred_check
      _
    $region3: #{decoder_forward.1} parent=1 // pred_check_branch
      %19 = sbr.rel (0) target = $region5
    $region4: #{decoder_forward.1} parent=1 // pred_region
      %s21 = ssub.s32 16, 16
      %22 = vsyncadd [#allocation5], %s21
      %s24 = sshll.u32 %s0, 4
      %s25 = int_to_ptr.vmem [resolvable:$true] %s24
      %27 = dma.vmem_to_smem %s25, 16, [#allocation2], [#allocation5]
    $region5: #{decoder_forward.1} parent=1 // pred_fallthru
      _
    // Predicated region
    $region6: #{decoder_forward.1} parent=1 // pred_check
      _
    $region7: #{decoder_forward.1} parent=1 // pred_check_branch
      %29 = sbr.rel (0) target = $region9
    $region8: #{decoder_forward.1} parent=1 // pred_region
      _
    $region9: #{decoder_forward.1} parent=1 // pred_fallthru
      _
    // Predicated region
    $region10: #{decoder_forward.1} parent=1 // pred_check
      _
    $region11: #{decoder_forward.1} parent=1 // pred_check_branch
      %31 = sbr.rel (0) target = $region13
    $region12: #{decoder_forward.1} parent=1 // pred_region
      %s33 = ssub.s32 32, 32
      %34 = vsyncadd [#allocation3], %s33
      %s36 = sshll.u32 [#allocation6], 4
      %s37 = int_to_ptr.vmem [resolvable:$true] %s36
      %39 = dma.hbm_to_vmem [thread:$0]  %s2, 32, %s37, [#allocation3]
    $region13: #{decoder_forward.1} parent=1 // pred_fallthru
      _
    // Predicated region
    $region14: #{decoder_forward.1} parent=1 // pred_check
      _
    $region15: #{decoder_forward.1} parent=1 // pred_check_branch
      %41 = sbr.rel (0) target = $region17
    $region16: #{decoder_forward.1} parent=1 // pred_region
      _
    $region17: #{decoder_forward.1} parent=1 // pred_fallthru
      _
    // Predicated region
    $region18: #{decoder_forward.1} parent=1 // pred_check
      _
    $region19: #{decoder_forward.1} parent=1 // pred_check_branch
      %43 = sbr.rel (0) target = $region21
    $region20: #{decoder_forward.1} parent=1 // pred_region
      _
    $region21: #{decoder_forward.1} parent=1 // pred_fallthru
      _
    // Predicated region
    $region22: #{decoder_forward.1} parent=1 // pred_check
      _
    $region23: #{decoder_forward.1} parent=1 // pred_check_branch
      %45 = sbr.rel (0) target = $region25
    $region24: #{decoder_forward.1} parent=1 // pred_region
      _
    $region25: #{decoder_forward.1} parent=1 // pred_fallthru
      _
    // Predicated region
    $region26: #{decoder_forward.1} parent=1 // pred_check
      _
    $region27: #{decoder_forward.1} parent=1 // pred_check_branch
      %47 = sbr.rel (0) target = $region29
    $region28: #{decoder_forward.1} parent=1 // pred_region
      _
    $region29: #{decoder_forward.1} parent=1 // pred_fallthru
      _
    // Predicated region
    $region30: #{decoder_forward.1} parent=1 // pred_check
      _
    $region31: #{decoder_forward.1} parent=1 // pred_check_branch
      %49 = sbr.rel (0) target = $region33
    $region32: #{decoder_forward.1} parent=1 // pred_region
      %50 = dma.done [#allocation5], 16
    $region33: #{decoder_forward.1} parent=1 // pred_fallthru
      _
    // Predicated region
    $region34: #{decoder_forward.1} parent=1 // pred_check
      _
    $region35: #{decoder_forward.1} parent=1 // pred_check_branch
      %52 = sbr.rel (0) target = $region37
    $region36: #{decoder_forward.1} parent=1 // pred_region
      %53 = dma.done [#allocation3], 32
    $region37: #{decoder_forward.1} parent=1 // pred_fallthru
      _
    %54 = sfence
    %v55 = vlaneseq
    %v56 = vand.u32 %v55, 127
    %s57 = sld [smem:[#allocation2]]
    %v58 = vstv %s57
    %vm59 = vcmp.eq.s32.totalorder %v56, %v58
    %v60 = vsel %vm59, 1, 0
    %v61 = vcvt.s32.f32 %v60
    %s62 = sld [smem:[#allocation2 + $0x1]]
    %v63 = vstv %s62
    %vm64 = vcmp.eq.s32.totalorder %v56, %v63
    %v65 = vsel %vm64, 1, 0
    %v66 = vcvt.s32.f32 %v65
    %vm67 = vcmask 1040384
    %v68 = vsel %vm67, %v61, %v66
    %v69 = vld [vmem:[%s1] sm:$0xff]
    %v70 = vld [vmem:[%s1 + $0x8] sm:$0xff]
    %v71 = vld [vmem:[%s1 + $0x10] sm:$0xff]
    %vm72 = vcmask 195584
    %v74 = vsel %vm72, %v68, 0
    %76 = vmatprep.subr.mxu0 0.0
    %77 = vmatpush1.msra.mxu0 0.0
    %78 = vmatprep.subr.mxu0 0.0
    %79 = vmatpush1.msra.mxu0 0.0
    %80 = vmatprep.subr.mxu0 0.0
    %81 = vmatpush1.msra.mxu0 0.0
    %82 = vmatprep.subr.mxu0 0.0
    %83 = vmatpush1.msra.mxu0 0.0
    %84 = vmatprep.subr.mxu0 0.0
    %85 = vmatpush1.msra.mxu0 0.0
    %86 = vmatprep.subr.mxu0 0.0
    %87 = vmatpush1.msra.mxu0 0.0
    %88 = vmatprep.subr.mxu0 0.0
    %89 = vmatpush1.msra.mxu0 0.0
    %90 = vmatprep.subr.mxu0 0.0
    %91 = vmatpush1.msra.mxu0 0.0
    %92 = vmatprep.subr.mxu0 0.0
    %93 = vmatpush1.msra.mxu0 0.0
    %94 = vmatprep.subr.mxu0 0.0
    %95 = vmatpush1.msra.mxu0 0.0
    %96 = vmatprep.subr.mxu0 0.0
    %97 = vmatpush1.msra.mxu0 0.0
    %98 = vmatprep.subr.mxu0 0.0
    %99 = vmatpush1.msra.mxu0 0.0
    %100 = vmatprep.subr.mxu0 0.0
    %101 = vmatpush1.msra.mxu0 0.0
    %102 = vmatprep.subr.mxu0 0.0
    %103 = vmatpush1.msra.mxu0 %v71
    %104 = vmatprep.subr.mxu0 0.0
    %105 = vmatpush1.msra.mxu0 %v70
    %106 = vmatprep.subr.mxu0 0.0
    %107 = vmatpush1.msra.mxu0 %v69
    %108 = vmatprep.subr.mxu0 0.0
    %109 = vmatpush2.msra.mxu0 0.0
    %110 = vmatprep.subr.mxu0 0.0
    %111 = vmatpush2.msra.mxu0 0.0
    %112 = vmatprep.subr.mxu0 0.0
    %113 = vmatpush2.msra.mxu0 0.0
    %114 = vmatprep.subr.mxu0 0.0
    %115 = vmatpush2.msra.mxu0 0.0
    %116 = vmatprep.subr.mxu0 0.0
    %117 = vmatpush2.msra.mxu0 0.0
    %118 = vmatprep.subr.mxu0 0.0
    %119 = vmatpush2.msra.mxu0 0.0
    %120 = vmatprep.subr.mxu0 0.0
    %121 = vmatpush2.msra.mxu0 0.0
    %122 = vmatprep.subr.mxu0 0.0
    %123 = vmatpush2.msra.mxu0 0.0
    %124 = vmatprep.subr.mxu0 0.0
    %125 = vmatpush2.msra.mxu0 0.0
    %126 = vmatprep.subr.mxu0 0.0
    %127 = vmatpush2.msra.mxu0 0.0
    %128 = vmatprep.subr.mxu0 0.0
    %129 = vmatpush2.msra.mxu0 0.0
    %130 = vmatprep.subr.mxu0 0.0
    %131 = vmatpush2.msra.mxu0 0.0
    %132 = vmatprep.subr.mxu0 0.0
    %133 = vmatpush2.msra.mxu0 0.0
    %134 = vmatprep.subr.mxu0 0.0
    %135 = vmatpush2.msra.mxu0 0.0
    %136 = vmatprep.subr.mxu0 0.0
    %137 = vmatpush2.msra.mxu0 0.0
    %138 = vmatprep.subr.mxu0 0.0
    %139 = vmatpush2.msra.mxu0 0.0
    %140 = vmatprep.mubr.f32.mxu0 0.0
    %141 = vmatmul.mubr.f32.gmra.mxu0 %v74
    %v142 = vpop.f32.mrf.mxu0
    %v143 = vadd.f32 0.0, %v142
    %v144 = vpop.f32.mrf.mxu0
    %145 = vdwg.mxu0
    %v146 = vld [vmem:[#allocation6] sm:$0x3]
    %v147 = vld [vmem:[%s3] sm:$0xff]
    %v148 = vld [vmem:[%s3 + $0x8] sm:$0xff]
    %v149 = vld [vmem:[%s4] sm:$0xff]
    %v150 = vld [vmem:[%s4 + $0x8] sm:$0xff]
    %v151 = vld [vmem:[%s4 + $0x10] sm:$0xff]
    %v152 = vld [vmem:[%s4 + $0x18] sm:$0xff]
    %v153 = vld [vmem:[%s4 + $0x20] sm:$0xff]
    %v154 = vld [vmem:[%s4 + $0x28] sm:$0xff]
    %v155 = vld [vmem:[%s4 + $0x30] sm:$0xff]
    %v156 = vld [vmem:[%s4 + $0x38] sm:$0xff]
    %v157 = vld [vmem:[%s4 + $0x40] sm:$0xff]
    %v158 = vld [vmem:[%s4 + $0x48] sm:$0xff]
    %v159 = vld [vmem:[%s5] sm:$0xff]
    %v160 = vld [vmem:[%s5 + $0x8] sm:$0xff]
    %v161 = vld [vmem:[%s5 + $0x10] sm:$0xff]
    %v162 = vld [vmem:[%s5 + $0x18] sm:$0xff]
    %v163 = vld [vmem:[%s5 + $0x20] sm:$0xff]
    %v164 = vld [vmem:[%s5 + $0x28] sm:$0xff]
    %v165 = vld [vmem:[%s5 + $0x30] sm:$0xff]
    %v166 = vld [vmem:[%s5 + $0x38] sm:$0xff]
    %v167 = vld [vmem:[%s5 + $0x40] sm:$0xff]
    %v168 = vld [vmem:[%s5 + $0x48] sm:$0xff]
    %v169 = vld [vmem:[%s5 + $0x50] sm:$0xff]
    %v170 = vld [vmem:[%s5 + $0x58] sm:$0xff]
    %v171 = vld [vmem:[%s6] sm:$0xff]
    %v172 = vld [vmem:[%s6 + $0x8] sm:$0xff]
    %v173 = vld [vmem:[%s6 + $0x10] sm:$0xff]
    %v174 = vld [vmem:[%s6 + $0x18] sm:$0xff]
    %v175 = vld [vmem:[%s6 + $0x20] sm:$0xff]
    %v176 = vld [vmem:[%s6 + $0x28] sm:$0xff]
    %v177 = vld [vmem:[%s6 + $0x30] sm:$0xff]
    %v178 = vld [vmem:[%s6 + $0x38] sm:$0xff]
    %v179 = vld [vmem:[%s6 + $0x40] sm:$0xff]
    %vm180 = vcmask 261120
    %v182 = vsel %vm180, %v147, 0
    %v185 = vsel %vm180, %v148, 0
    %187 = vmatprep.subr.mxu0 0.0
    %188 = vmatpush1.msra.mxu0 0.0
    %189 = vmatprep.subr.mxu0 0.0
    %190 = vmatpush1.msra.mxu0 0.0
    %191 = vmatprep.subr.mxu0 0.0
    %192 = vmatpush1.msra.mxu0 0.0
    %193 = vmatprep.subr.mxu0 0.0
    %194 = vmatpush1.msra.mxu0 0.0
    %195 = vmatprep.subr.mxu0 0.0
    %196 = vmatpush1.msra.mxu0 0.0
    %197 = vmatprep.subr.mxu0 0.0
    %198 = vmatpush1.msra.mxu0 0.0
    %199 = vmatprep.subr.mxu0 0.0
    %200 = vmatpush1.msra.mxu0 0.0
    %201 = vmatprep.subr.mxu0 0.0
    %202 = vmatpush1.msra.mxu0 0.0
    %203 = vmatprep.subr.mxu0 0.0
    %204 = vmatpush1.msra.mxu0 0.0
    %205 = vmatprep.subr.mxu0 0.0
    %206 = vmatpush1.msra.mxu0 0.0
    %207 = vmatprep.subr.mxu0 0.0
    %208 = vmatpush1.msra.mxu0 0.0
    %209 = vmatprep.subr.mxu0 0.0
    %210 = vmatpush1.msra.mxu0 0.0
    %211 = vmatprep.subr.mxu0 0.0
    %212 = vmatpush1.msra.mxu0 %v152
    %213 = vmatprep.subr.mxu0 0.0
    %214 = vmatpush1.msra.mxu0 %v151
    %215 = vmatprep.subr.mxu0 0.0
    %216 = vmatpush1.msra.mxu0 %v150
    %217 = vmatprep.subr.mxu0 0.0
    %218 = vmatpush1.msra.mxu0 %v149
    %219 = vmatprep.subr.mxu0 0.0
    %220 = vmatpush2.msra.mxu0 0.0
    %221 = vmatprep.subr.mxu0 0.0
    %222 = vmatpush2.msra.mxu0 0.0
    %223 = vmatprep.subr.mxu0 0.0
    %224 = vmatpush2.msra.mxu0 0.0
    %225 = vmatprep.subr.mxu0 0.0
    %226 = vmatpush2.msra.mxu0 0.0
    %227 = vmatprep.subr.mxu0 0.0
    %228 = vmatpush2.msra.mxu0 0.0
    %229 = vmatprep.subr.mxu0 0.0
    %230 = vmatpush2.msra.mxu0 0.0
    %231 = vmatprep.subr.mxu0 0.0
    %232 = vmatpush2.msra.mxu0 0.0
    %233 = vmatprep.subr.mxu0 0.0
    %234 = vmatpush2.msra.mxu0 0.0
    %235 = vmatprep.subr.mxu0 0.0
    %236 = vmatpush2.msra.mxu0 0.0
    %237 = vmatprep.subr.mxu0 0.0
    %238 = vmatpush2.msra.mxu0 0.0
    %239 = vmatprep.subr.mxu0 0.0
    %240 = vmatpush2.msra.mxu0 0.0
    %241 = vmatprep.subr.mxu0 0.0
    %242 = vmatpush2.msra.mxu0 0.0
    %243 = vmatprep.subr.mxu0 0.0
    %244 = vmatpush2.msra.mxu0 0.0
    %245 = vmatprep.subr.mxu0 0.0
    %246 = vmatpush2.msra.mxu0 0.0
    %247 = vmatprep.subr.mxu0 0.0
    %248 = vmatpush2.msra.mxu0 0.0
    %249 = vmatprep.subr.mxu0 0.0
    %250 = vmatpush2.msra.mxu0 0.0
    %251 = vmatprep.mubr.f32.mxu0 0.0
    %252 = vmatmul.mubr.f32.gmra.mxu0 %v182
    %v253 = vpop.f32.mrf.mxu0
    %v254 = vadd.f32 0.0, %v253
    %v255 = vpop.f32.mrf.mxu0
    %256 = vmatprep.mubr.f32.mxu0 0.0
    %257 = vmatmul.mubr.f32.gmra.mxu0 %v185
    %v258 = vpop.f32.mrf.mxu0
    %v259 = vadd.f32 0.0, %v258
    %v260 = vpop.f32.mrf.mxu0
    %261 = vdwg.mxu0
    %v263 = vsel %vm180, %v146, 0
    %265 = vmatprep.subr.mxu0 0.0
    %266 = vmatpush1.msra.mxu0 0.0
    %267 = vmatprep.subr.mxu0 0.0
    %268 = vmatpush1.msra.mxu0 0.0
    %269 = vmatprep.subr.mxu0 0.0
    %270 = vmatpush1.msra.mxu0 0.0
    %271 = vmatprep.subr.mxu0 0.0
    %272 = vmatpush1.msra.mxu0 0.0
    %273 = vmatprep.subr.mxu0 0.0
    %274 = vmatpush1.msra.mxu0 0.0
    %275 = vmatprep.subr.mxu0 0.0
    %276 = vmatpush1.msra.mxu0 0.0
    %277 = vmatprep.subr.mxu0 0.0
    %278 = vmatpush1.msra.mxu0 0.0
    %279 = vmatprep.subr.mxu0 0.0
    %280 = vmatpush1.msra.mxu0 0.0
    %281 = vmatprep.subr.mxu0 0.0
    %282 = vmatpush1.msra.mxu0 0.0
    %283 = vmatprep.subr.mxu0 0.0
    %284 = vmatpush1.msra.mxu0 0.0
    %285 = vmatprep.subr.mxu0 0.0
    %286 = vmatpush1.msra.mxu0 0.0
    %287 = vmatprep.subr.mxu0 0.0
    %288 = vmatpush1.msra.mxu0 0.0
    %289 = vmatprep.subr.mxu0 0.0
    %290 = vmatpush1.msra.mxu0 %v156
    %291 = vmatprep.subr.mxu0 0.0
    %292 = vmatpush1.msra.mxu0 %v155
    %293 = vmatprep.subr.mxu0 0.0
    %294 = vmatpush1.msra.mxu0 %v154
    %295 = vmatprep.subr.mxu0 0.0
    %296 = vmatpush1.msra.mxu0 %v153
    %297 = vmatprep.subr.mxu0 0.0
    %298 = vmatpush2.msra.mxu0 0.0
    %299 = vmatprep.subr.mxu0 0.0
    %300 = vmatpush2.msra.mxu0 0.0
    %301 = vmatprep.subr.mxu0 0.0
    %302 = vmatpush2.msra.mxu0 0.0
    %303 = vmatprep.subr.mxu0 0.0
    %304 = vmatpush2.msra.mxu0 0.0
    %305 = vmatprep.subr.mxu0 0.0
    %306 = vmatpush2.msra.mxu0 0.0
    %307 = vmatprep.subr.mxu0 0.0
    %308 = vmatpush2.msra.mxu0 0.0
    %309 = vmatprep.subr.mxu0 0.0
    %310 = vmatpush2.msra.mxu0 0.0
    %311 = vmatprep.subr.mxu0 0.0
    %312 = vmatpush2.msra.mxu0 0.0
    %313 = vmatprep.subr.mxu0 0.0
    %314 = vmatpush2.msra.mxu0 0.0
    %315 = vmatprep.subr.mxu0 0.0
    %316 = vmatpush2.msra.mxu0 0.0
    %317 = vmatprep.subr.mxu0 0.0
    %318 = vmatpush2.msra.mxu0 0.0
    %319 = vmatprep.subr.mxu0 0.0
    %320 = vmatpush2.msra.mxu0 0.0
    %321 = vmatprep.subr.mxu0 0.0
    %322 = vmatpush2.msra.mxu0 0.0
    %323 = vmatprep.subr.mxu0 0.0
    %324 = vmatpush2.msra.mxu0 0.0
    %325 = vmatprep.subr.mxu0 0.0
    %326 = vmatpush2.msra.mxu0 0.0
    %327 = vmatprep.subr.mxu0 0.0
    %328 = vmatpush2.msra.mxu0 0.0
    %329 = vmatprep.mubr.f32.mxu0 0.0
    %330 = vmatmul.mubr.f32.gmra.mxu0 %v263
    %v331 = vpop.f32.mrf.mxu0
    %v332 = vadd.f32 0.0, %v331
    %v333 = vpop.f32.mrf.mxu0
    %334 = vdwg.mxu0
    %v337 = vunpack.c.l.s4 1966171168
    %v338 = vunpack.c.0.s8 %v337
    %v339 = vlaneseq
    %v340 = vshrl.u32 %v339, 7
    %v341 = vsub.s32 %v338, %v340
    %v342 = vrot.slane %v332, %v341
    %v343 = vcombine.high %v342, %v342
    %v345 = vunpack.c.l.s4 1966171168
    %v346 = vunpack.c.0.s8 %v345
    %v347 = vlaneseq
    %v348 = vshrl.u32 %v347, 7
    %v349 = vsub.s32 %v346, %v348
    %v350 = vrot.slane %v342, %v349
    %v352 = vunpack.c.l.s4 1966171168
    %v353 = vunpack.c.0.s8 %v352
    %v354 = vlaneseq
    %v355 = vshrl.u32 %v354, 7
    %v356 = vsub.s32 %v353, %v355
    %v357 = vrot.slane %v343, %v356
    %v358 = vlaneseq
    %v359 = vshrl.u32 %v358, 7
    %v360 = vsub.s32 0, %v359
    %v361 = vrot.slane %v350, %v360
    %v362 = vlaneseq
    %v363 = vshrl.u32 %v362, 7
    %v364 = vsub.s32 0, %v363
    %v365 = vrot.slane %v357, %v364
    %v368 = vadd.f32 %v254, %v361
    %v369 = vadd.f32 %v259, %v365
    %v370 = vlaneseq
    %v371 = vshrl.u32 %v370, 7
    %v372 = vsub.s32 0, %v371
    %v373 = vrot.slane %v157, %v372
    %v374 = vadd.f32 %v368, %v373
    %v375 = vadd.f32 %v369, %v373
    %v376 = vtanh.pop %v374
    %v377 = vtanh.pop %v375
    %v378 = vlaneseq
    %v379 = vshrl.u32 %v378, 7
    %v380 = vsub.s32 0, %v379
    %v381 = vrot.slane %v158, %v380
    %v382 = vmul.f32 %v376, %v381
    %v383 = vmul.f32 %v377, %v381
    %v384 = vsel %vm180, %v382, 0.0
    %385 = vadd.xlane.f32.xlu0 %v384
    %v386 = vpop.xlane.xlu0 %385
    %v387 = vsel %vm180, %v383, 0.0
    %388 = vadd.xlane.f32.xlu0 %v387
    %v389 = vpop.xlane.xlu0 %388
    %v392 = vlaneseq
    %v393 = vshrl.u32 %v392, 7
    %v394 = vsub.s32 %v56, %v393
    %v395 = vrot.slane %v386, %v394
    %v396 = vlaneseq
    %v397 = vshrl.u32 %v396, 7
    %v398 = vsub.s32 %v56, %v397
    %v399 = vrot.slane %v389, %v398
    %vm400 = vcmask 1041409
    %v401 = vsel %vm400, %v399, %v395
    %vm403 = vcmask 58368
    %v404 = vsel %vm403, %v401, -inf
    %405 = vmax.xlane.f32.xlu0 %v404
    %v406 = vpop.xlane.xlu0 %405
    %v408 = vlaneseq
    %v409 = vshrl.u32 %v408, 7
    %v410 = vsub.s32 0, %v409
    %v411 = vrot.slane %v406, %v410
    %v412 = vlaneseq
    %v413 = vshrl.u32 %v412, 7
    %v414 = vsub.s32 1, %v413
    %v415 = vrot.slane %v406, %v414
    %v418 = vsub.f32 %v386, %v411
    %v419 = vsub.f32 %v389, %v415
    %v420 = vmul.f32 %v418, 1.442695
    %v421 = vpow.pop %v420
    %v422 = vmul.f32 %v419, 1.442695
    %v423 = vpow.pop %v422
    %426 = vset.pattern.permute.xlu0 0
    %427 = vperm.xlu0 %426, %v421
    %v428 = vpop.permute.xlu0 %427
    %429 = vset.pattern.permute.xlu0 0
    %430 = vperm.xlu0 %429, %v423
    %v431 = vpop.permute.xlu0 %430
    %v432 = vlaneseq
    %v433 = vshrl.u32 %v432, 7
    %v434 = vsub.s32 %v56, %v433
    %v435 = vrot.slane %v428, %v434
    %v436 = vlaneseq
    %v437 = vshrl.u32 %v436, 7
    %v438 = vsub.s32 %v56, %v437
    %v439 = vrot.slane %v431, %v438
    %v440 = vsel %vm400, %v439, %v435
    %v442 = vsel %vm403, %v440, 0.0
    %443 = vadd.xlane.f32.xlu0 %v442
    %v444 = vpop.xlane.xlu0 %443
    %v445 = vrcp.pop %v444
    %v447 = vlaneseq
    %v448 = vshrl.u32 %v447, 7
    %v449 = vsub.s32 0, %v448
    %v450 = vrot.slane %v445, %v449
    %v451 = vlaneseq
    %v452 = vshrl.u32 %v451, 7
    %v453 = vsub.s32 1, %v452
    %v454 = vrot.slane %v445, %v453
    %v457 = vmul.f32 %v421, %v450
    %v458 = vmul.f32 %v423, %v454
    %460 = vset.pattern.permute.xlu0 0
    %461 = vperm.xlu0 %460, %v457
    %v462 = vpop.permute.xlu0 %461
    %465 = vset.pattern.permute.xlu0 0
    %466 = vperm.xlu0 %465, %v458
    %v467 = vpop.permute.xlu0 %466
    %v469 = vmul.f32 %v462, %v147
    %v470 = vmul.f32 %v467, %v148
    %v471 = vsel %vm180, %v469, 0.0
    %v472 = vrot.slane %v471, 4
    %v473 = vadd.f32 %v471, %v472
    %v474 = vrot.slane %v473, 2
    %v475 = vadd.f32 %v473, %v474
    %v476 = vrot.slane %v475, 1
    %v477 = vadd.f32 %v475, %v476
    %v478 = vsel %vm180, %v470, 0.0
    %v479 = vrot.slane %v478, 4
    %v480 = vadd.f32 %v478, %v479
    %v481 = vrot.slane %v480, 2
    %v482 = vadd.f32 %v480, %v481
    %v483 = vrot.slane %v482, 1
    %v484 = vadd.f32 %v482, %v483
    %v487 = vsel %vm400, %v484, %v477
    %488 = vrot.lane.b32.xlu0 %v487, 16
    %v489 = vpop.permute.xlu0 %488
    %vm491 = vcmask 130048
    %v492 = vsel %vm491, %v143, %v489
    %v493 = vlaneseq
    %v494 = vshrl.u32 %v493, 7
    %v495 = vsub.s32 0, %v494
    %v496 = vrot.slane %v169, %v495
    %vm497 = vcmask 392192
    %v499 = vsel %vm497, %v492, 0
    %501 = vmatprep.subr.mxu0 0.0
    %502 = vmatpush1.msra.mxu0 0.0
    %503 = vmatprep.subr.mxu0 0.0
    %504 = vmatpush1.msra.mxu0 0.0
    %505 = vmatprep.subr.mxu0 0.0
    %506 = vmatpush1.msra.mxu0 0.0
    %507 = vmatprep.subr.mxu0 0.0
    %508 = vmatpush1.msra.mxu0 0.0
    %509 = vmatprep.subr.mxu0 0.0
    %510 = vmatpush1.msra.mxu0 0.0
    %511 = vmatprep.subr.mxu0 0.0
    %512 = vmatpush1.msra.mxu0 0.0
    %513 = vmatprep.subr.mxu0 0.0
    %514 = vmatpush1.msra.mxu0 0.0
    %515 = vmatprep.subr.mxu0 0.0
    %516 = vmatpush1.msra.mxu0 0.0
    %517 = vmatprep.subr.mxu0 0.0
    %518 = vmatpush1.msra.mxu0 0.0
    %519 = vmatprep.subr.mxu0 0.0
    %520 = vmatpush1.msra.mxu0 0.0
    %521 = vmatprep.subr.mxu0 0.0
    %522 = vmatpush1.msra.mxu0 %v164
    %523 = vmatprep.subr.mxu0 0.0
    %524 = vmatpush1.msra.mxu0 %v163
    %525 = vmatprep.subr.mxu0 0.0
    %526 = vmatpush1.msra.mxu0 %v162
    %527 = vmatprep.subr.mxu0 0.0
    %528 = vmatpush1.msra.mxu0 %v161
    %529 = vmatprep.subr.mxu0 0.0
    %530 = vmatpush1.msra.mxu0 %v160
    %531 = vmatprep.subr.mxu0 0.0
    %532 = vmatpush1.msra.mxu0 %v159
    %533 = vmatprep.subr.mxu0 0.0
    %534 = vmatpush2.msra.mxu0 0.0
    %535 = vmatprep.subr.mxu0 0.0
    %536 = vmatpush2.msra.mxu0 0.0
    %537 = vmatprep.subr.mxu0 0.0
    %538 = vmatpush2.msra.mxu0 0.0
    %539 = vmatprep.subr.mxu0 0.0
    %540 = vmatpush2.msra.mxu0 0.0
    %541 = vmatprep.subr.mxu0 0.0
    %542 = vmatpush2.msra.mxu0 0.0
    %543 = vmatprep.subr.mxu0 0.0
    %544 = vmatpush2.msra.mxu0 0.0
    %545 = vmatprep.subr.mxu0 0.0
    %546 = vmatpush2.msra.mxu0 0.0
    %547 = vmatprep.subr.mxu0 0.0
    %548 = vmatpush2.msra.mxu0 0.0
    %549 = vmatprep.subr.mxu0 0.0
    %550 = vmatpush2.msra.mxu0 0.0
    %551 = vmatprep.subr.mxu0 0.0
    %552 = vmatpush2.msra.mxu0 0.0
    %553 = vmatprep.subr.mxu0 0.0
    %554 = vmatpush2.msra.mxu0 0.0
    %555 = vmatprep.subr.mxu0 0.0
    %556 = vmatpush2.msra.mxu0 0.0
    %557 = vmatprep.subr.mxu0 0.0
    %558 = vmatpush2.msra.mxu0 0.0
    %559 = vmatprep.subr.mxu0 0.0
    %560 = vmatpush2.msra.mxu0 0.0
    %561 = vmatprep.subr.mxu0 0.0
    %562 = vmatpush2.msra.mxu0 0.0
    %563 = vmatprep.subr.mxu0 0.0
    %564 = vmatpush2.msra.mxu0 0.0
    %565 = vmatprep.mubr.f32.mxu0 0.0
    %566 = vmatmul.mubr.f32.gmra.mxu0 %v499
    %v567 = vpop.f32.mrf.mxu0
    %v568 = vadd.f32 %v496, %v567
    %v569 = vpop.f32.mrf.mxu0
    %570 = vdwg.mxu0
    %v571 = vlaneseq
    %v572 = vshrl.u32 %v571, 7
    %v573 = vsub.s32 0, %v572
    %v574 = vrot.slane %v170, %v573
    %575 = vmatprep.subr.mxu0 0.0
    %576 = vmatpush1.msra.mxu0 0.0
    %577 = vmatprep.subr.mxu0 0.0
    %578 = vmatpush1.msra.mxu0 0.0
    %579 = vmatprep.subr.mxu0 0.0
    %580 = vmatpush1.msra.mxu0 0.0
    %581 = vmatprep.subr.mxu0 0.0
    %582 = vmatpush1.msra.mxu0 0.0
    %583 = vmatprep.subr.mxu0 0.0
    %584 = vmatpush1.msra.mxu0 0.0
    %585 = vmatprep.subr.mxu0 0.0
    %586 = vmatpush1.msra.mxu0 0.0
    %587 = vmatprep.subr.mxu0 0.0
    %588 = vmatpush1.msra.mxu0 0.0
    %589 = vmatprep.subr.mxu0 0.0
    %590 = vmatpush1.msra.mxu0 0.0
    %591 = vmatprep.subr.mxu0 0.0
    %592 = vmatpush1.msra.mxu0 0.0
    %593 = vmatprep.subr.mxu0 0.0
    %594 = vmatpush1.msra.mxu0 0.0
    %595 = vmatprep.subr.mxu0 0.0
    %596 = vmatpush1.msra.mxu0 0.0
    %597 = vmatprep.subr.mxu0 0.0
    %598 = vmatpush1.msra.mxu0 0.0
    %599 = vmatprep.subr.mxu0 0.0
    %600 = vmatpush1.msra.mxu0 %v168
    %601 = vmatprep.subr.mxu0 0.0
    %602 = vmatpush1.msra.mxu0 %v167
    %603 = vmatprep.subr.mxu0 0.0
    %604 = vmatpush1.msra.mxu0 %v166
    %605 = vmatprep.subr.mxu0 0.0
    %606 = vmatpush1.msra.mxu0 %v165
    %607 = vmatprep.subr.mxu0 0.0
    %608 = vmatpush2.msra.mxu0 0.0
    %609 = vmatprep.subr.mxu0 0.0
    %610 = vmatpush2.msra.mxu0 0.0
    %611 = vmatprep.subr.mxu0 0.0
    %612 = vmatpush2.msra.mxu0 0.0
    %613 = vmatprep.subr.mxu0 0.0
    %614 = vmatpush2.msra.mxu0 0.0
    %615 = vmatprep.subr.mxu0 0.0
    %616 = vmatpush2.msra.mxu0 0.0
    %617 = vmatprep.subr.mxu0 0.0
    %618 = vmatpush2.msra.mxu0 0.0
    %619 = vmatprep.subr.mxu0 0.0
    %620 = vmatpush2.msra.mxu0 0.0
    %621 = vmatprep.subr.mxu0 0.0
    %622 = vmatpush2.msra.mxu0 0.0
    %623 = vmatprep.subr.mxu0 0.0
    %624 = vmatpush2.msra.mxu0 0.0
    %625 = vmatprep.subr.mxu0 0.0
    %626 = vmatpush2.msra.mxu0 0.0
    %627 = vmatprep.subr.mxu0 0.0
    %628 = vmatpush2.msra.mxu0 0.0
    %629 = vmatprep.subr.mxu0 0.0
    %630 = vmatpush2.msra.mxu0 0.0
    %631 = vmatprep.subr.mxu0 0.0
    %632 = vmatpush2.msra.mxu0 0.0
    %633 = vmatprep.subr.mxu0 0.0
    %634 = vmatpush2.msra.mxu0 0.0
    %635 = vmatprep.subr.mxu0 0.0
    %636 = vmatpush2.msra.mxu0 0.0
    %637 = vmatprep.subr.mxu0 0.0
    %638 = vmatpush2.msra.mxu0 0.0
    %639 = vmatprep.mubr.f32.mxu0 0.0
    %640 = vmatmul.mubr.f32.gmra.mxu0 %v263
    %v641 = vpop.f32.mrf.mxu0
    %v642 = vadd.f32 %v574, %v641
    %v643 = vpop.f32.mrf.mxu0
    %644 = vdwg.mxu0
    %v645 = vadd.f32 %v568, %v642
    %v646 = vxor.u32 %v645, 2147483648
    %v647 = vmul.f32 %v646, 1.442695
    %v648 = vpow.pop %v647
    %v649 = vadd.f32 %v648, 1.0
    %v650 = vrcp.pop %v649
    %v651 = vmul.f32 1.0, %v650
    %653 = vrot.lane.b32.xlu0 %v642, 64
    %v654 = vpop.permute.xlu0 %653
    %v656 = vmul.f32 %v651, %v654
    %658 = vrot.lane.b32.xlu0 %v656, 64
    %v659 = vpop.permute.xlu0 %658
    %v661 = vadd.f32 %v568, %v659
    %v662 = vtanh.pop %v661
    %v663 = vsub.f32 1.0, %v651
    %665 = vrot.lane.b32.xlu0 %v662, 96
    %v666 = vpop.permute.xlu0 %665
    %v668 = vmul.f32 %v663, %v666
    %669 = vrot.lane.b32.xlu0 %v146, 32
    %v670 = vpop.permute.xlu0 %669
    %v672 = vmul.f32 %v651, %v670
    %v673 = vadd.f32 %v668, %v672
    %675 = vrot.lane.b32.xlu0 %v673, 96
    %v676 = vpop.permute.xlu0 %675
    %678 = vrot.lane.b32.xlu0 %v487, 32
    %v679 = vpop.permute.xlu0 %678
    %v681 = vsel %vm180, %v676, %v679
    %v682 = vlaneseq
    %v683 = vshrl.u32 %v682, 7
    %v684 = vsub.s32 0, %v683
    %v685 = vrot.slane %v179, %v684
    %vm686 = vcmask 523264
    %v688 = vsel %vm686, %v681, 0
    %690 = vmatprep.subr.mxu0 0.0
    %691 = vmatpush1.msra.mxu0 0.0
    %692 = vmatprep.subr.mxu0 0.0
    %693 = vmatpush1.msra.mxu0 0.0
    %694 = vmatprep.subr.mxu0 0.0
    %695 = vmatpush1.msra.mxu0 0.0
    %696 = vmatprep.subr.mxu0 0.0
    %697 = vmatpush1.msra.mxu0 0.0
    %698 = vmatprep.subr.mxu0 0.0
    %699 = vmatpush1.msra.mxu0 0.0
    %700 = vmatprep.subr.mxu0 0.0
    %701 = vmatpush1.msra.mxu0 0.0
    %702 = vmatprep.subr.mxu0 0.0
    %703 = vmatpush1.msra.mxu0 0.0
    %704 = vmatprep.subr.mxu0 0.0
    %705 = vmatpush1.msra.mxu0 0.0
    %706 = vmatprep.subr.mxu0 0.0
    %707 = vmatpush1.msra.mxu0 %v178
    %708 = vmatprep.subr.mxu0 0.0
    %709 = vmatpush1.msra.mxu0 %v177
    %710 = vmatprep.subr.mxu0 0.0
    %711 = vmatpush1.msra.mxu0 %v176
    %712 = vmatprep.subr.mxu0 0.0
    %713 = vmatpush1.msra.mxu0 %v175
    %714 = vmatprep.subr.mxu0 0.0
    %715 = vmatpush1.msra.mxu0 %v174
    %716 = vmatprep.subr.mxu0 0.0
    %717 = vmatpush1.msra.mxu0 %v173
    %718 = vmatprep.subr.mxu0 0.0
    %719 = vmatpush1.msra.mxu0 %v172
    %720 = vmatprep.subr.mxu0 0.0
    %721 = vmatpush1.msra.mxu0 %v171
    %722 = vmatprep.subr.mxu0 0.0
    %723 = vmatpush2.msra.mxu0 0.0
    %724 = vmatprep.subr.mxu0 0.0
    %725 = vmatpush2.msra.mxu0 0.0
    %726 = vmatprep.subr.mxu0 0.0
    %727 = vmatpush2.msra.mxu0 0.0
    %728 = vmatprep.subr.mxu0 0.0
    %729 = vmatpush2.msra.mxu0 0.0
    %730 = vmatprep.subr.mxu0 0.0
    %731 = vmatpush2.msra.mxu0 0.0
    %732 = vmatprep.subr.mxu0 0.0
    %733 = vmatpush2.msra.mxu0 0.0
    %734 = vmatprep.subr.mxu0 0.0
    %735 = vmatpush2.msra.mxu0 0.0
    %736 = vmatprep.subr.mxu0 0.0
    %737 = vmatpush2.msra.mxu0 0.0
    %738 = vmatprep.subr.mxu0 0.0
    %739 = vmatpush2.msra.mxu0 0.0
    %740 = vmatprep.subr.mxu0 0.0
    %741 = vmatpush2.msra.mxu0 0.0
    %742 = vmatprep.subr.mxu0 0.0
    %743 = vmatpush2.msra.mxu0 0.0
    %744 = vmatprep.subr.mxu0 0.0
    %745 = vmatpush2.msra.mxu0 0.0
    %746 = vmatprep.subr.mxu0 0.0
    %747 = vmatpush2.msra.mxu0 0.0
    %748 = vmatprep.subr.mxu0 0.0
    %749 = vmatpush2.msra.mxu0 0.0
    %750 = vmatprep.subr.mxu0 0.0
    %751 = vmatpush2.msra.mxu0 0.0
    %752 = vmatprep.subr.mxu0 0.0
    %753 = vmatpush2.msra.mxu0 0.0
    %754 = vmatprep.mubr.f32.mxu0 0.0
    %755 = vmatmul.mubr.f32.gmra.mxu0 %v688
    %v756 = vpop.f32.mrf.mxu0
    %v757 = vadd.f32 %v685, %v756
    %v758 = vpop.f32.mrf.mxu0
    %759 = vdwg.mxu0
    %vm760 = vcmask 189440
    %v761 = vsel %vm760, %v757, -inf
    %762 = vmax.xlane.f32.xlu0 %v761
    %v763 = vpop.xlane.xlu0 %762
    %v764 = vsub.f32 %v757, %v763
    %v765 = vmul.f32 %v764, 1.442695
    %v766 = vpow.pop %v765
    %v767 = vsel %vm760, %v766, 0.0
    %768 = vadd.xlane.f32.xlu0 %v767
    %v769 = vpop.xlane.xlu0 %768
    %v770 = vlog2.pop %v769
    %v771 = vmul.f32 %v770, 0.6931472
    %v772 = vadd.f32 %v771, %v763
    %v773 = vsub.f32 %v757, %v772
    %774 = vst.msk [vmem:[#allocation7] sm:$0x3] %vm760, %v773
    %vm775 = vcmask 254976
    %776 = vst.msk [vmem:[#allocation8] sm:$0x3] %vm775, %v676
    // Predicated region
    $region38: #{decoder_forward.1} parent=1 // pred_check
      _
    $region39: #{decoder_forward.1} parent=1 // pred_check_branch
      %778 = sbr.rel (0) target = $region41
    $region40: #{decoder_forward.1} parent=1 // pred_region
      %s780 = ssub.s32 32, 32
      %781 = vsyncadd [#allocation4], %s780
      %s783 = sshll.u32 [#allocation7], 4
      %s784 = int_to_ptr.vmem [resolvable:$true] %s783
      %786 = dma.vmem_to_hbm [thread:$0]  %s784, 32, %s7, [#allocation4]
    $region41: #{decoder_forward.1} parent=1 // pred_fallthru
      _
    // Predicated region
    $region42: #{decoder_forward.1} parent=1 // pred_check
      _
    $region43: #{decoder_forward.1} parent=1 // pred_check_branch
      %788 = sbr.rel (0) target = $region45
    $region44: #{decoder_forward.1} parent=1 // pred_region
      %s790 = ssub.s32 32, 32
      %791 = vsyncadd [#allocation9], %s790
      %s793 = sshll.u32 [#allocation8], 4
      %s794 = int_to_ptr.vmem [resolvable:$true] %s793
      %796 = dma.vmem_to_hbm [thread:$0]  %s794, 32, %s8, [#allocation9]
    $region45: #{decoder_forward.1} parent=1 // pred_fallthru
      _
    // Predicated region
    $region46: #{decoder_forward.1} parent=1 // pred_check
      _
    $region47: #{decoder_forward.1} parent=1 // pred_check_branch
      %798 = sbr.rel (0) target = $region49
    $region48: #{decoder_forward.1} parent=1 // pred_region
      %799 = dma.done [#allocation4], 32
    $region49: #{decoder_forward.1} parent=1 // pred_fallthru
      _
    // Predicated region
    $region50: #{decoder_forward.1} parent=1 // pred_check
      _
    $region51: #{decoder_forward.1} parent=1 // pred_check_branch
      %801 = sbr.rel (0) target = $region53
    $region52: #{decoder_forward.1} parent=1 // pred_region
      %802 = dma.done [#allocation9], 32
    $region53: #{decoder_forward.1} parent=1 // pred_fallthru
      _
    %803 = vsyncpa [#allocation3], 1
    %804 = vsyncpa [#allocation4], 1
    %805 = vsyncpa [#allocation9], 1
    %806 = vsyncpa [#allocation5], 1

</llo_original>
